<compile_context>
chip_gen: v7x
topology: tpu7x:2x2x1
jax: 0.10.0
libtpu: 0.0.40
codegen_flags: <defaults>
</compile_context>

<pallas_src>
import functools

import jax
import jax.numpy as jnp
from jax.experimental import pallas as pl
from jax.experimental.pallas import tpu as pltpu

_LANES = 128
_SUBLANES = 8


def _round_up(x, m):
    return ((x + m - 1) // m) * m


def _msl_stream_kernel(p_ref, t_ref, out_ref, acc_ref, *, inv_n):
    """One stream (force OR torque): mean((log(p+1) - log(t+1))^2)."""
    i = pl.program_id(0)

    @pl.when(i == 0)
    def _init():
        acc_ref[...] = jnp.zeros_like(acc_ref)

    pv = p_ref[...].astype(jnp.float32)
    tv = t_ref[...].astype(jnp.float32)

    # log((p+1)/(t+1)) == log(p+1) - log(t+1) up to ulps; one EUP log + one
    # reciprocal instead of two full logs.  Zero-padded elements give
    # log(1/1) = 0, so padding is numerically inert.
    d = jnp.log((pv + 1.0) / (tv + 1.0))
    sq = d * d

    # Fold (rows,128) -> (8,128).  The reshape groups 8 consecutive rows,
    # aligned with the native (8,128) tile, so it is layout-free; the
    # accumulator RMW is a single vreg per step instead of rows/8 vregs.
    rows = sq.shape[0]
    folded = jnp.sum(sq.reshape(rows // _SUBLANES, _SUBLANES, _LANES), axis=0)
    acc_ref[...] += folded

    @pl.when(i == pl.num_programs(0) - 1)
    def _finalize():
        total = jnp.sum(acc_ref[...]) * inv_n
        out_ref[...] = jnp.full(out_ref.shape, total, dtype=out_ref.dtype)


def _mean_sq_log_diff_pallas(pred, target, *, tile_rows):
    """Pallas reduction for a single stream (pred/target of identical shape)."""
    n = pred.size
    rows = pl.cdiv(n, _LANES)

    tile_rows = max(_SUBLANES, _round_up(int(tile_rows), _SUBLANES))
    # Adaptive tile: aim for >= ~8 grid steps before capping at tile_rows so
    # per-stream padding waste stays a small fraction of the stream.
    min_inner = 8
    t = max(_SUBLANES,
            min(tile_rows, _round_up(pl.cdiv(rows, min_inner), _SUBLANES)))
    padded_rows = _round_up(rows, t)
    inner = padded_rows // t

    def slab(x):
        flat = jnp.ravel(x)                       # contiguous reshape: no copy
        pad = padded_rows * _LANES - flat.size
        if pad:
            # TODO(synk): copy-free path (in-kernel masked tail block) to avoid
            # the full pad copy on HBM-bound v5e.
            flat = jnp.pad(flat, (0, pad))
        return flat.reshape(padded_rows, _LANES)  # lane-dense (rows, 128) slab

    p_slab = slab(pred)
    t_slab = slab(target)

    kernel = functools.partial(_msl_stream_kernel, inv_n=1.0 / float(n))
    in_spec = pl.BlockSpec((t, _LANES), lambda i: (i, 0))

    out = pl.pallas_call(
        kernel,
        out_shape=jax.ShapeDtypeStruct((_SUBLANES, _LANES), jnp.float32),
        grid_spec=pltpu.PrefetchScalarGridSpec(
            num_scalar_prefetch=0,
            grid=(inner,),
            in_specs=[in_spec, in_spec],
            out_specs=pl.BlockSpec((_SUBLANES, _LANES), lambda i: (0, 0)),
            scratch_shapes=[pltpu.VMEM((_SUBLANES, _LANES), jnp.float32)],
        ),
        compiler_params=pltpu.CompilerParams(
            # Single reduction axis with a resident accumulator/output.
            # TODO(synk): on v7x (2 TCs) add a leading CORE_PARALLEL axis once
            # megacore sharding is verified to kick in via xprof.
            dimension_semantics=("arbitrary",),
        ),
    )(p_slab, t_slab)

    return out[0, 0]


def msl_loss(pred_force, target_force, pred_torque, target_torque,
             *, tile_rows=2048, min_pallas_elements=65536):
    """Pallas-accelerated MSLLoss.  Force and torque may have different shapes;
    pred/target within each stream must match.  Streams below
    `min_pallas_elements` use a pure-JAX fallback (kernel launch overhead would
    dominate)."""
    assert pred_force.shape == target_force.shape
    assert pred_torque.shape == target_torque.shape

    def one_stream(pred, target):
        n = pred.size
        if n == 0:
            # torch.mean of an empty tensor is NaN; keep parity and avoid 1/0.
            return jnp.float32(jnp.nan)
        if n < min_pallas_elements:
            p = pred.astype(jnp.float32)
            t = target.astype(jnp.float32)
            return jnp.mean((jnp.log(p + 1.0) - jnp.log(t + 1.0)) ** 2)
        return _mean_sq_log_diff_pallas(pred, target, tile_rows=tile_rows)

    return (one_stream(pred_force, target_force)
            + one_stream(pred_torque, target_torque))


def msl_loss_ref(pf, tf, pt, tt):
    return (jnp.mean((jnp.log(pf + 1.0) - jnp.log(tf + 1.0)) ** 2)
            + jnp.mean((jnp.log(pt + 1.0) - jnp.log(tt + 1.0)) ** 2))


if __name__ == "__main__":
    key = jax.random.PRNGKey(0)
    k1, k2, k3, k4 = jax.random.split(key, 4)

    N, D = 128, 3  # 128 particles, 3-component force / torque vectors
    # positive magnitudes (log(x+1) well-defined)
    pred_force = jax.random.uniform(k1, (N, D), jnp.float32, 0.0, 5.0)
    target_force = jax.random.uniform(k2, (N, D), jnp.float32, 0.0, 5.0)
    pred_torque = jax.random.uniform(k3, (N, D), jnp.float32, 0.0, 5.0)
    target_torque = jax.random.uniform(k4, (N, D), jnp.float32, 0.0, 5.0)

    # Force the Pallas path even at this small size (min_pallas_elements=0).
    loss = msl_loss(pred_force, target_force, pred_torque, target_torque,
                    min_pallas_elements=0)
    loss = jax.block_until_ready(loss)
    ref = msl_loss_ref(pred_force, target_force, pred_torque, target_torque)
    assert jnp.allclose(loss, ref, rtol=1e-5, atol=1e-6), (loss, ref)

    # Exercise the multi-step inner reduction path (small tile) and unequal
    # force/torque sizes (independent padding + separate mean divisors).
    k5, k6, k7, k8 = jax.random.split(jax.random.PRNGKey(1), 4)
    pf2 = jax.random.uniform(k5, (1024, 3), jnp.float32, 0.0, 5.0)
    tf2 = jax.random.uniform(k6, (1024, 3), jnp.float32, 0.0, 5.0)
    pt2 = jax.random.uniform(k7, (500, 3), jnp.float32, 0.0, 5.0)
    tt2 = jax.random.uniform(k8, (500, 3), jnp.float32, 0.0, 5.0)
    loss2 = jax.block_until_ready(
        msl_loss(pf2, tf2, pt2, tt2, tile_rows=8, min_pallas_elements=0))
    ref2 = msl_loss_ref(pf2, tf2, pt2, tt2)
    assert jnp.allclose(loss2, ref2, rtol=1e-5, atol=1e-6), (loss2, ref2)

    # Default behaviour at small sizes: pure-JAX fallback, identical result.
    loss3 = jax.block_until_ready(
        msl_loss(pred_force, target_force, pred_torque, target_torque))
    assert jnp.allclose(loss3, ref, rtol=1e-5, atol=1e-6), (loss3, ref)

    print("KERNEL_OK")
</pallas_src>

<mosaic_0001>
module attributes {stable_mosaic.version = 11 : i64} {
  func.func @_msl_stream_kernel(%arg0: i32, %arg1: memref<8x128xf32, #tpu.memory_space<vmem>>, %arg2: memref<8x128xf32, #tpu.memory_space<vmem>>, %arg3: memref<8x128xf32, #tpu.memory_space<vmem>>, %arg4: memref<8x128xf32, #tpu.memory_space<vmem>>) attributes {dimension_semantics = [#tpu.dimension_semantics<arbitrary>], iteration_bounds = array<i64: 1>, scalar_prefetch = 0 : i64, scratch_operands = 1 : i64, tpu.core_type = #tpu.core_type<tc>, window_params = [{transform_indices = @transform_0, window_bounds = array<i64: 8, 128>}, {transform_indices = @transform_1, window_bounds = array<i64: 8, 128>}, {pipeline_mode = #tpu.pipeline_mode<synchronous>, transform_indices = @transform_2, window_bounds = array<i64: 8, 128>}]} {
    %c0_i32 = arith.constant 0 : i32
    %0 = arith.cmpi eq, %arg0, %c0_i32 : i32
    %1 = arith.extui %0 : i1 to i32
    %c0_i32_0 = arith.constant 0 : i32
    %2 = arith.cmpi ne, %1, %c0_i32_0 : i32
    scf.if %2 {
      %cst_12 = arith.constant 0.000000e+00 : f32
      %20 = vector.broadcast %cst_12 : f32 to vector<8x128xf32>
      %c0_13 = arith.constant 0 : index
      %c0_14 = arith.constant 0 : index
      %21 = vector.load %arg4[%c0_13, %c0_14] : memref<8x128xf32, #tpu.memory_space<vmem>>, vector<8x128xf32>
      tpu.vector_store %arg4[%c0_13, %c0_14], %20 {strides = array<i32>} : memref<8x128xf32, #tpu.memory_space<vmem>>, vector<8x128xf32>,
    } else {
    }
    %c0 = arith.constant 0 : index
    %c0_1 = arith.constant 0 : index
    %3 = vector.load %arg1[%c0, %c0_1] : memref<8x128xf32, #tpu.memory_space<vmem>>, vector<8x128xf32>
    %c0_2 = arith.constant 0 : index
    %c0_3 = arith.constant 0 : index
    %4 = vector.load %arg2[%c0_2, %c0_3] : memref<8x128xf32, #tpu.memory_space<vmem>>, vector<8x128xf32>
    %cst = arith.constant 1.000000e+00 : f32
    %5 = vector.broadcast %cst : f32 to vector<8x128xf32>
    %6 = arith.addf %3, %5 : vector<8x128xf32>
    %cst_4 = arith.constant 1.000000e+00 : f32
    %7 = vector.broadcast %cst_4 : f32 to vector<8x128xf32>
    %8 = arith.addf %4, %7 : vector<8x128xf32>
    %9 = arith.divf %6, %8 : vector<8x128xf32>
    %10 = math.log %9 : vector<8x128xf32>
    %11 = arith.mulf %10, %10 : vector<8x128xf32>
    %12 = vector.shape_cast %11 : vector<8x128xf32> to vector<1x8x128xf32>
    %cst_5 = arith.constant dense<0.000000e+00> : vector<8x128xf32>
    %13 = vector.multi_reduction <add>, %12, %cst_5 [0] : vector<1x8x128xf32> to vector<8x128xf32>
    %c0_6 = arith.constant 0 : index
    %c0_7 = arith.constant 0 : index
    %14 = vector.load %arg4[%c0_6, %c0_7] : memref<8x128xf32, #tpu.memory_space<vmem>>, vector<8x128xf32>
    %15 = arith.addf %14, %13 : vector<8x128xf32>
    %c0_8 = arith.constant 0 : index
    %c0_9 = arith.constant 0 : index
    %16 = vector.load %arg4[%c0_8, %c0_9] : memref<8x128xf32, #tpu.memory_space<vmem>>, vector<8x128xf32>
    tpu.vector_store %arg4[%c0_8, %c0_9], %15 {strides = array<i32>} : memref<8x128xf32, #tpu.memory_space<vmem>>, vector<8x128xf32>,
    %c0_i32_10 = arith.constant 0 : i32
    %17 = arith.cmpi eq, %arg0, %c0_i32_10 : i32
    %18 = arith.extui %17 : i1 to i32
    %c0_i32_11 = arith.constant 0 : i32
    %19 = arith.cmpi ne, %18, %c0_i32_11 : i32
    scf.if %19 {
      %c0_12 = arith.constant 0 : index
      %c0_13 = arith.constant 0 : index
      %20 = vector.load %arg4[%c0_12, %c0_13] : memref<8x128xf32, #tpu.memory_space<vmem>>, vector<8x128xf32>
      %21 = vector.shape_cast %20 : vector<8x128xf32> to vector<1x8x128xf32>
      %cst_14 = arith.constant dense<0.000000e+00> : vector<1xf32>
      %22 = vector.multi_reduction <add>, %21, %cst_14 [1, 2] : vector<1x8x128xf32> to vector<1xf32>
      %23 = vector.shape_cast %22 : vector<1xf32> to vector<1x1x1xf32>
      %24 = vector.extract %23[0, 0, 0] : f32 from vector<1x1x1xf32>
      %cst_15 = arith.constant 0.00260416674 : f32
      %25 = arith.mulf %24, %cst_15 : f32
      %26 = vector.broadcast %25 : f32 to vector<8x128xf32>
      %c0_16 = arith.constant 0 : index
      %c0_17 = arith.constant 0 : index
      %27 = vector.load %arg3[%c0_16, %c0_17] : memref<8x128xf32, #tpu.memory_space<vmem>>, vector<8x128xf32>
      tpu.vector_store %arg3[%c0_16, %c0_17], %26 {strides = array<i32>} : memref<8x128xf32, #tpu.memory_space<vmem>>, vector<8x128xf32>,
    } else {
    }
    return
  }
  func.func @transform_0(%arg0: i32) -> (i32, i32) {
    %c0_i32 = arith.constant 0 : i32
    %c0_i32_0 = arith.constant 0 : i32
    return %arg0, %c0_i32 : i32, i32
  }
  func.func @transform_1(%arg0: i32) -> (i32, i32) {
    %c0_i32 = arith.constant 0 : i32
    %c0_i32_0 = arith.constant 0 : i32
    return %arg0, %c0_i32 : i32, i32
  }
  func.func @transform_2(%arg0: i32) -> (i32, i32) {
    %c0_i32 = arith.constant 0 : i32
    %c0_i32_0 = arith.constant 0 : i32
    %c0_i32_1 = arith.constant 0 : i32
    return %c0_i32, %c0_i32_0 : i32, i32
  }
}

</mosaic_0001>

<llo_original>
// kernel: tpu_custom_call.1
$region0: #{tpu_custom_call.1}
  #allocation0 [shape = 'u32[]', space=smem, size = 0x4, offset = 0x4, fixed_abs, tag = 'smem constant byte address 0x4 - core index']
  #allocation1 [shape = 'u32[144,128]{1,0:T(1,128)}', space=vmem, size = 0x12000, scoped, tag = 'internal scratch']
  #allocation2 [shape = 'f32[8,128]{1,0:T(8,128)}', space=vmem, size = 0x1000, scoped, tag = 'scratch operand']
  %s0 = inlined_call_operand.hbm [shape: f32[8,128], index: 0, kind: input, shape index: {}]
  %s1 = inlined_call_operand.hbm [shape: f32[8,128], index: 1, kind: input, shape index: {}]
  %s2 = inlined_call_operand.hbm [shape: f32[8,128], index: 2, kind: output, shape index: {}]
  %s3 = sld [smem:[#allocation0]]
  $region34: #{tpu_custom_call.1} parent=0
    _
  %s5 = ssub.s32 1, %s3
  %s6 = scalar_select 0, %s5, %s3
  $region1: #{tpu_custom_call.1} parent=0
    #allocation3 [shape = 'u8[4096]{0}', space=vmem, size = 0x1000, scoped, tag = 'input window, operand 0, single buffered']
    #allocation4 [shape = 's32[1]{0}', space=sflag, size = 0x4, scoped, tag = 'scoped memory for tpu_custom_call.1']
    #allocation5 [shape = 's32[1]{0}', space=sflag, size = 0x4, scoped, tag = 'scoped memory for tpu_custom_call.1']
    #allocation6 [shape = 'u8[4096]{0}', space=vmem, size = 0x1000, scoped, tag = 'input window, operand 1, single buffered']
    #allocation7 [shape = 's32[1]{0}', space=sflag, size = 0x4, scoped, tag = 'scoped memory for tpu_custom_call.1']
    #allocation8 [shape = 'u8[4096]{0}', space=vmem, size = 0x1000, scoped, tag = 'output window, operand 0, single buffered']
    %7 = vsyncpa [#allocation4], 0
    %8 = vsyncpa [#allocation7], 0
    %9 = vsyncpa [#allocation5], 0
    // Predicated region
    $region2: #{tpu_custom_call.1} parent=1 // pred_check
      _
    $region3: #{tpu_custom_call.1} parent=1 // pred_check_branch
      %11 = sbr.rel (0) target = $region5
    $region4: #{tpu_custom_call.1} parent=1 // pred_region
      %s13 = ssub.s32 128, 128
      %14 = vsyncadd [#allocation4], %s13
      %s16 = sshll.u32 [#allocation3], 4
      %s17 = int_to_ptr.vmem [resolvable:$true] %s16
      %19 = dma.hbm_to_vmem [thread:$0]  %s0, 128, %s17, [#allocation4]
    $region5: #{tpu_custom_call.1} parent=1 // pred_fallthru
      _
    // Predicated region
    $region6: #{tpu_custom_call.1} parent=1 // pred_check
      _
    $region7: #{tpu_custom_call.1} parent=1 // pred_check_branch
      %21 = sbr.rel (0) target = $region9
    $region8: #{tpu_custom_call.1} parent=1 // pred_region
      %s23 = ssub.s32 128, 128
      %24 = vsyncadd [#allocation7], %s23
      %s26 = sshll.u32 [#allocation6], 4
      %s27 = int_to_ptr.vmem [resolvable:$true] %s26
      %29 = dma.hbm_to_vmem [thread:$0]  %s1, 128, %s27, [#allocation7]
    $region9: #{tpu_custom_call.1} parent=1 // pred_fallthru
      _
    // Predicated region
    $region10: #{tpu_custom_call.1} parent=1 // pred_check
      _
    $region11: #{tpu_custom_call.1} parent=1 // pred_check_branch
      %31 = sbr.rel (0) target = $region13
    $region12: #{tpu_custom_call.1} parent=1 // pred_region
      %32 = dma.done [#allocation4], 128
    $region13: #{tpu_custom_call.1} parent=1 // pred_fallthru
      _
    // Predicated region
    $region14: #{tpu_custom_call.1} parent=1 // pred_check
      _
    $region15: #{tpu_custom_call.1} parent=1 // pred_check_branch
      %34 = sbr.rel (0) target = $region17
    $region16: #{tpu_custom_call.1} parent=1 // pred_region
      %35 = dma.done [#allocation7], 128
    $region17: #{tpu_custom_call.1} parent=1 // pred_fallthru
      _
    %p36 = scmp.eq.s32.totalorder 0, 0
    // Predicated region
    $region18: #{tpu_custom_call.1} parent=1 // pred_check
      %p37 = pneg %p36
    $region19: #{tpu_custom_call.1} parent=1 // pred_check_branch
      %39 = sbr.rel (%p37) target = $region21
    $region20: #{tpu_custom_call.1} parent=1 // pred_region
      %40 = vst [vmem:[#allocation2] sm:$0xff] 0.0
    $region21: #{tpu_custom_call.1} parent=1 // pred_fallthru
      _
    %v41 = vld [vmem:[#allocation3] sm:$0xff]
    %v42 = vld [vmem:[#allocation6] sm:$0xff]
    %v43 = vadd.f32 %v41, 1.0
    %v44 = vadd.f32 %v42, 1.0
    %v45 = vrcp.pop %v44
    %v46 = vmul.f32 %v43, %v45
    %v47 = vlog2.pop %v46
    %v48 = vmul.f32 %v47, 0.6931472
    %v49 = vmul.f32 %v48, %v48
    %v50 = vadd.f32 %v49, 0.0
    %v51 = vld [vmem:[#allocation2] sm:$0xff]
    %v52 = vadd.f32 %v51, %v50
    %53 = vst [vmem:[#allocation2] sm:$0xff] %v52
    // Predicated region
    $region22: #{tpu_custom_call.1} parent=1 // pred_check
      %p54 = pneg %p36
    $region23: #{tpu_custom_call.1} parent=1 // pred_check_branch
      %56 = sbr.rel (%p54) target = $region25
    $region24: #{tpu_custom_call.1} parent=1 // pred_region
      %v57 = vld [vmem:[#allocation2] sm:$0xff]
      %58 = vadd.xlane.f32.xlu0 %v57
      %v59 = vpop.xlane.xlu0 %58
      %v60 = vrot.slane %v59, 4
      %v61 = vadd.f32 %v59, %v60
      %v62 = vrot.slane %v61, 2
      %v63 = vadd.f32 %v61, %v62
      %v64 = vrot.slane %v63, 1
      %v65 = vadd.f32 %v63, %v64
      %s66 = vtos %v65
      %s67 = smul.f32 %s66, 0.0026041667
      %v68 = vstv %s67
      %69 = vst [vmem:[#allocation8] sm:$0xff] %v68
    $region25: #{tpu_custom_call.1} parent=1 // pred_fallthru
      _
    // Predicated region
    $region26: #{tpu_custom_call.1} parent=1 // pred_check
      _
    $region27: #{tpu_custom_call.1} parent=1 // pred_check_branch
      %71 = sbr.rel (0) target = $region29
    $region28: #{tpu_custom_call.1} parent=1 // pred_region
      %s73 = ssub.s32 128, 128
      %74 = vsyncadd [#allocation5], %s73
      %s76 = sshll.u32 [#allocation8], 4
      %s77 = int_to_ptr.vmem [resolvable:$true] %s76
      %79 = dma.vmem_to_hbm [thread:$0]  %s77, 128, %s2, [#allocation5]
    $region29: #{tpu_custom_call.1} parent=1 // pred_fallthru
      _
    // Predicated region
    $region30: #{tpu_custom_call.1} parent=1 // pred_check
      _
    $region31: #{tpu_custom_call.1} parent=1 // pred_check_branch
      %81 = sbr.rel (0) target = $region33
    $region32: #{tpu_custom_call.1} parent=1 // pred_region
      %82 = dma.done [#allocation5], 128
    $region33: #{tpu_custom_call.1} parent=1 // pred_fallthru
      _
    %83 = vsyncpa [#allocation4], 1
    %84 = vsyncpa [#allocation7], 1
    %85 = vsyncpa [#allocation5], 1

</llo_original>
